<compile_context>
chip_gen: v5e
topology: v5e:2x2
jax: 0.10.0
libtpu: 0.0.40
codegen_flags: <defaults>
</compile_context>

<pallas_src>
import jax
import jax.numpy as jnp
from jax.experimental import pallas as pl
from jax.experimental.pallas import tpu as pltpu  # noqa: F401 (kept for future tiling/compiler_params)


def linear_kernel(x_ref, w_ref, b_ref, o_ref):
    """Single-shot linear: o = x @ w + b.

    x_ref: (B, K) bf16, w_ref: (K, N) bf16, b_ref: (1, N) f32.
    MXU matmul with f32 accumulation; bias added in f32.
    """
    acc = jnp.dot(x_ref[...], w_ref[...], preferred_element_type=jnp.float32)
    o_ref[...] = (acc + b_ref[...]).astype(o_ref.dtype)


def encoder_head(x, w_t_bf16, b):
    """Pallas implementation of Encoder.forward: y = x @ w_t + b.

    x        : (B, K)  f32 (cast to bf16 here, once, outside the kernel)
    w_t_bf16 : (K, N)  bf16 (PyTorch weight transposed, pre-cast at setup)
    b        : (1, N)  f32
    Returns  : (B, N)  f32
    """
    B, K = x.shape
    K2, N = w_t_bf16.shape
    assert K == K2
    assert b.shape == (1, N)

    x_bf16 = x.astype(jnp.bfloat16)

    # Advisory cost hint so XLA treats this custom call as tiny.
    cost = pl.CostEstimate(
        flops=2 * B * K * N,
        bytes_accessed=(
            x_bf16.dtype.itemsize * B * K        # activations
            + w_t_bf16.dtype.itemsize * K * N    # weight
            + b.dtype.itemsize * N               # bias
            + 4 * B * N                          # f32 output
        ),
        transcendentals=0,
    )

    # Whole problem fits VMEM trivially on v5e/v6e/v7x (<100 KB), so run it
    # as one block with no grid: full-array BlockSpecs, no accumulator, no
    # pl.when phase gates.
    return pl.pallas_call(
        linear_kernel,
        out_shape=jax.ShapeDtypeStruct((B, N), jnp.float32),
        in_specs=[
            pl.BlockSpec((B, K), lambda: (0, 0)),   # x, full array
            pl.BlockSpec((K, N), lambda: (0, 0)),   # weight, full array
            pl.BlockSpec((1, N), lambda: (0, 0)),   # bias, full array
        ],
        out_specs=pl.BlockSpec((B, N), lambda: (0, 0)),
        cost_estimate=cost,
    )(x_bf16, w_t_bf16, b)


def encoder_head_xla(x, w_t, b):
    """Pure-JAX path: preferred in production for this size — lets XLA fuse
    the head directly into the producer of the 512-d features."""
    return x @ w_t + b


if __name__ == "__main__":
    latent_size = 16
    in_features = 512                 # fixed by nn.Linear(512, latent_size*2)
    out_features = latent_size * 2    # 32
    batch = 8

    key = jax.random.PRNGKey(0)
    kx, kw, kb = jax.random.split(key, 3)

    # Deterministic "Linear" parameters (PyTorch-style uniform init bounds).
    bound = 1.0 / jnp.sqrt(jnp.float32(in_features))
    w = jax.random.uniform(
        kw, (out_features, in_features), jnp.float32, -bound, bound
    )  # PyTorch layout (out, in)
    b = jax.random.uniform(kb, (out_features,), jnp.float32, -bound, bound)

    # Input: already-extracted 512-d features, as Encoder.forward expects.
    x = jax.random.normal(kx, (batch, in_features), jnp.float32)

    # One-time weight prep, outside the hot path: transpose + bf16 cast.
    w_t_bf16 = w.T.astype(jnp.bfloat16)   # (512, 32)
    b2d = b.reshape(1, out_features)      # (1, 32), kept in f32

    y = encoder_head(x, w_t_bf16, b2d)
    y = jax.block_until_ready(y)

    # Correctness check against plain JAX f32 reference (looser tolerance
    # since MXU inputs are bf16; accumulation is still f32).
    y_ref = x @ w.T + b
    assert y.shape == (batch, out_features)
    assert y.dtype == jnp.float32
    assert jnp.allclose(y, y_ref, atol=2e-2, rtol=2e-2)

    print("KERNEL_OK")
</pallas_src>

<mosaic_0001>
module attributes {stable_mosaic.version = 11 : i64} {
  func.func @linear_kernel(%arg0: memref<8x512xbf16, #tpu.memory_space<vmem>>, %arg1: memref<512x32xbf16, #tpu.memory_space<vmem>>, %arg2: memref<1x32xf32, #tpu.memory_space<vmem>>, %arg3: memref<8x32xf32, #tpu.memory_space<vmem>>) attributes {dimension_semantics = [], scalar_prefetch = 0 : i64, scratch_operands = 0 : i64, tpu.core_type = #tpu.core_type<tc>} {
    %c0 = arith.constant 0 : index
    %c0_0 = arith.constant 0 : index
    %0 = vector.load %arg0[%c0, %c0_0] : memref<8x512xbf16, #tpu.memory_space<vmem>>, vector<8x512xbf16>
    %c0_1 = arith.constant 0 : index
    %c0_2 = arith.constant 0 : index
    %1 = vector.load %arg1[%c0_1, %c0_2] : memref<512x32xbf16, #tpu.memory_space<vmem>>, vector<512x32xbf16>
    %cst = arith.constant dense<0.000000e+00> : vector<8x32xf32>
    %2 = tpu.matmul %0, %1, %cst {dimension_numbers = #tpu.dot_dimension_numbers<[1], [0], [0], [1], [0, 0, 1, 1], [], []>} : vector<8x512xbf16>, vector<512x32xbf16>, vector<8x32xf32> -> vector<8x32xf32>
    %c0_3 = arith.constant 0 : index
    %c0_4 = arith.constant 0 : index
    %3 = vector.load %arg2[%c0_3, %c0_4] : memref<1x32xf32, #tpu.memory_space<vmem>>, vector<1x32xf32>
    %4 = vector.broadcast %3 : vector<1x32xf32> to vector<8x32xf32>
    %5 = arith.addf %2, %4 : vector<8x32xf32>
    %c0_5 = arith.constant 0 : index
    %c0_6 = arith.constant 0 : index
    %6 = vector.load %arg3[%c0_5, %c0_6] : memref<8x32xf32, #tpu.memory_space<vmem>>, vector<8x32xf32>
    tpu.vector_store %arg3[%c0_5, %c0_6], %5 {strides = array<i32>} : memref<8x32xf32, #tpu.memory_space<vmem>>, vector<8x32xf32>,
    return
  }
}

</mosaic_0001>

<llo_original>
// kernel: tpu_custom_call.1
$region0: #{tpu_custom_call.1}
  #allocation0 [shape = 'u32[]', space=smem, size = 0x4, offset = 0x4, fixed_abs, tag = 'smem constant byte address 0x4 - core index']
  #allocation1 [shape = 'u32[72,128]{1,0:T(1,128)}', space=vmem, size = 0x9000, scoped, tag = 'internal scratch']
  %s0 = inlined_call_operand.vmem [shape: bf16[8,512], index: 0, kind: input, shape index: {}]
  %s1 = inlined_call_operand.vmem [shape: bf16[512,32], index: 1, kind: input, shape index: {}]
  %s2 = inlined_call_operand.vmem [shape: f32[1,32], index: 2, kind: input, shape index: {}]
  %s3 = inlined_call_operand.hbm [shape: f32[8,32], index: 3, kind: output, shape index: {}]
  %s4 = sld [smem:[#allocation0]]
  $region22: #{tpu_custom_call.1} parent=0
    _
  %s6 = ssub.s32 1, %s4
  %s7 = scalar_select 0, %s6, %s4
  $region1: #{tpu_custom_call.1} parent=0
    #allocation2 [shape = 'u8[4096]{0}', space=vmem, size = 0x1000, scoped, tag = 'output window, operand 0, single buffered']
    #allocation3 [shape = 's32[1]{0}', space=sflag, size = 0x4, scoped, tag = 'scoped memory for tpu_custom_call.1']
    %8 = vsyncpa [#allocation3], 0
    // Predicated region
    $region2: #{tpu_custom_call.1} parent=1 // pred_check
      _
    $region3: #{tpu_custom_call.1} parent=1 // pred_check_branch
      %10 = sbr.rel (0) target = $region5
    $region4: #{tpu_custom_call.1} parent=1 // pred_region
      _
    $region5: #{tpu_custom_call.1} parent=1 // pred_fallthru
      _
    // Predicated region
    $region6: #{tpu_custom_call.1} parent=1 // pred_check
      _
    $region7: #{tpu_custom_call.1} parent=1 // pred_check_branch
      %12 = sbr.rel (0) target = $region9
    $region8: #{tpu_custom_call.1} parent=1 // pred_region
      _
    $region9: #{tpu_custom_call.1} parent=1 // pred_fallthru
      _
    // Predicated region
    $region10: #{tpu_custom_call.1} parent=1 // pred_check
      _
    $region11: #{tpu_custom_call.1} parent=1 // pred_check_branch
      %14 = sbr.rel (0) target = $region13
    $region12: #{tpu_custom_call.1} parent=1 // pred_region
      _
    $region13: #{tpu_custom_call.1} parent=1 // pred_fallthru
      _
    %v15 = vld [vmem:[%s0] sm:$0xff]
    %v16 = vld [vmem:[%s0 + $0x8] sm:$0xff]
    %v17 = vld [vmem:[%s1] sm:$0xf]
    %v18 = vld [vmem:[%s1 + $0x4] sm:$0xf]
    %v19 = vld [vmem:[%s1 + $0x8] sm:$0xf]
    %v20 = vld [vmem:[%s1 + $0xc] sm:$0xf]
    %v21 = vld [vmem:[%s1 + $0x10] sm:$0xf]
    %v22 = vld [vmem:[%s1 + $0x14] sm:$0xf]
    %v23 = vld [vmem:[%s1 + $0x18] sm:$0xf]
    %v24 = vld [vmem:[%s1 + $0x1c] sm:$0xf]
    %v25 = vld [vmem:[%s1 + $0x20] sm:$0xf]
    %v26 = vld [vmem:[%s1 + $0x24] sm:$0xf]
    %v27 = vld [vmem:[%s1 + $0x28] sm:$0xf]
    %v28 = vld [vmem:[%s1 + $0x2c] sm:$0xf]
    %v29 = vld [vmem:[%s1 + $0x30] sm:$0xf]
    %v30 = vld [vmem:[%s1 + $0x34] sm:$0xf]
    %v31 = vld [vmem:[%s1 + $0x38] sm:$0xf]
    %v32 = vld [vmem:[%s1 + $0x3c] sm:$0xf]
    %v33 = vld [vmem:[%s1 + $0x40] sm:$0xf]
    %v34 = vld [vmem:[%s1 + $0x44] sm:$0xf]
    %v35 = vld [vmem:[%s1 + $0x48] sm:$0xf]
    %v36 = vld [vmem:[%s1 + $0x4c] sm:$0xf]
    %v37 = vld [vmem:[%s1 + $0x50] sm:$0xf]
    %v38 = vld [vmem:[%s1 + $0x54] sm:$0xf]
    %v39 = vld [vmem:[%s1 + $0x58] sm:$0xf]
    %v40 = vld [vmem:[%s1 + $0x5c] sm:$0xf]
    %v41 = vld [vmem:[%s1 + $0x60] sm:$0xf]
    %v42 = vld [vmem:[%s1 + $0x64] sm:$0xf]
    %v43 = vld [vmem:[%s1 + $0x68] sm:$0xf]
    %v44 = vld [vmem:[%s1 + $0x6c] sm:$0xf]
    %v45 = vld [vmem:[%s1 + $0x70] sm:$0xf]
    %v46 = vld [vmem:[%s1 + $0x74] sm:$0xf]
    %v47 = vld [vmem:[%s1 + $0x78] sm:$0xf]
    %v48 = vld [vmem:[%s1 + $0x7c] sm:$0xf]
    %v49 = vld [vmem:[%s1 + $0x80] sm:$0xf]
    %v50 = vld [vmem:[%s1 + $0x84] sm:$0xf]
    %v51 = vld [vmem:[%s1 + $0x88] sm:$0xf]
    %v52 = vld [vmem:[%s1 + $0x8c] sm:$0xf]
    %v53 = vld [vmem:[%s1 + $0x90] sm:$0xf]
    %v54 = vld [vmem:[%s1 + $0x94] sm:$0xf]
    %v55 = vld [vmem:[%s1 + $0x98] sm:$0xf]
    %v56 = vld [vmem:[%s1 + $0x9c] sm:$0xf]
    %v57 = vld [vmem:[%s1 + $0xa0] sm:$0xf]
    %v58 = vld [vmem:[%s1 + $0xa4] sm:$0xf]
    %v59 = vld [vmem:[%s1 + $0xa8] sm:$0xf]
    %v60 = vld [vmem:[%s1 + $0xac] sm:$0xf]
    %v61 = vld [vmem:[%s1 + $0xb0] sm:$0xf]
    %v62 = vld [vmem:[%s1 + $0xb4] sm:$0xf]
    %v63 = vld [vmem:[%s1 + $0xb8] sm:$0xf]
    %v64 = vld [vmem:[%s1 + $0xbc] sm:$0xf]
    %v65 = vld [vmem:[%s1 + $0xc0] sm:$0xf]
    %v66 = vld [vmem:[%s1 + $0xc4] sm:$0xf]
    %v67 = vld [vmem:[%s1 + $0xc8] sm:$0xf]
    %v68 = vld [vmem:[%s1 + $0xcc] sm:$0xf]
    %v69 = vld [vmem:[%s1 + $0xd0] sm:$0xf]
    %v70 = vld [vmem:[%s1 + $0xd4] sm:$0xf]
    %v71 = vld [vmem:[%s1 + $0xd8] sm:$0xf]
    %v72 = vld [vmem:[%s1 + $0xdc] sm:$0xf]
    %v73 = vld [vmem:[%s1 + $0xe0] sm:$0xf]
    %v74 = vld [vmem:[%s1 + $0xe4] sm:$0xf]
    %v75 = vld [vmem:[%s1 + $0xe8] sm:$0xf]
    %v76 = vld [vmem:[%s1 + $0xec] sm:$0xf]
    %v77 = vld [vmem:[%s1 + $0xf0] sm:$0xf]
    %v78 = vld [vmem:[%s1 + $0xf4] sm:$0xf]
    %v79 = vld [vmem:[%s1 + $0xf8] sm:$0xf]
    %v80 = vld [vmem:[%s1 + $0xfc] sm:$0xf]
    %v81 = vld [vmem:[%s2] sm:$0x1]
    %v83 = vperm.slane %v81, 0
    %v87 = vunpack.c.l.b16 %v15
    %v88 = vunpack.c.h.b16 %v15
    %v89 = vunpack.c.l.b16 %v16
    %v90 = vunpack.c.h.b16 %v16
    %v91 = vpack.c.b16 %v87, %v87
    %v92 = vpack.c.b16 %v88, %v88
    %v93 = vpack.c.b16 %v89, %v89
    %v94 = vpack.c.b16 %v90, %v90
    %v163 = vunpack.c.l.b16 %v17
    %v164 = vunpack.c.l.b16 %v18
    %v165 = vunpack.c.l.b16 %v19
    %v166 = vunpack.c.l.b16 %v20
    %v167 = vunpack.c.l.b16 %v21
    %v168 = vunpack.c.l.b16 %v22
    %v169 = vunpack.c.l.b16 %v23
    %v170 = vunpack.c.l.b16 %v24
    %v171 = vunpack.c.l.b16 %v25
    %v172 = vunpack.c.l.b16 %v26
    %v173 = vunpack.c.l.b16 %v27
    %v174 = vunpack.c.l.b16 %v28
    %v175 = vunpack.c.l.b16 %v29
    %v176 = vunpack.c.l.b16 %v30
    %v177 = vunpack.c.l.b16 %v31
    %v178 = vunpack.c.l.b16 %v32
    %v179 = vunpack.c.l.b16 %v33
    %v180 = vunpack.c.l.b16 %v34
    %v181 = vunpack.c.l.b16 %v35
    %v182 = vunpack.c.l.b16 %v36
    %v183 = vunpack.c.l.b16 %v37
    %v184 = vunpack.c.l.b16 %v38
    %v185 = vunpack.c.l.b16 %v39
    %v186 = vunpack.c.l.b16 %v40
    %v187 = vunpack.c.l.b16 %v41
    %v188 = vunpack.c.l.b16 %v42
    %v189 = vunpack.c.l.b16 %v43
    %v190 = vunpack.c.l.b16 %v44
    %v191 = vunpack.c.l.b16 %v45
    %v192 = vunpack.c.l.b16 %v46
    %v193 = vunpack.c.l.b16 %v47
    %v194 = vunpack.c.l.b16 %v48
    %v195 = vunpack.c.l.b16 %v49
    %v196 = vunpack.c.l.b16 %v50
    %v197 = vunpack.c.l.b16 %v51
    %v198 = vunpack.c.l.b16 %v52
    %v199 = vunpack.c.l.b16 %v53
    %v200 = vunpack.c.l.b16 %v54
    %v201 = vunpack.c.l.b16 %v55
    %v202 = vunpack.c.l.b16 %v56
    %v203 = vunpack.c.l.b16 %v57
    %v204 = vunpack.c.l.b16 %v58
    %v205 = vunpack.c.l.b16 %v59
    %v206 = vunpack.c.l.b16 %v60
    %v207 = vunpack.c.l.b16 %v61
    %v208 = vunpack.c.l.b16 %v62
    %v209 = vunpack.c.l.b16 %v63
    %v210 = vunpack.c.l.b16 %v64
    %v211 = vunpack.c.l.b16 %v65
    %v212 = vunpack.c.l.b16 %v66
    %v213 = vunpack.c.l.b16 %v67
    %v214 = vunpack.c.l.b16 %v68
    %v215 = vunpack.c.l.b16 %v69
    %v216 = vunpack.c.l.b16 %v70
    %v217 = vunpack.c.l.b16 %v71
    %v218 = vunpack.c.l.b16 %v72
    %v219 = vunpack.c.l.b16 %v73
    %v220 = vunpack.c.l.b16 %v74
    %v221 = vunpack.c.l.b16 %v75
    %v222 = vunpack.c.l.b16 %v76
    %v223 = vunpack.c.l.b16 %v77
    %v224 = vunpack.c.l.b16 %v78
    %v225 = vunpack.c.l.b16 %v79
    %v226 = vunpack.c.l.b16 %v80
    %v227 = vpack.c.b16 %v164, %v163
    %v228 = vpack.c.b16 %v166, %v165
    %v229 = vpack.c.b16 %v168, %v167
    %v230 = vpack.c.b16 %v170, %v169
    %v231 = vpack.c.b16 %v172, %v171
    %v232 = vpack.c.b16 %v174, %v173
    %v233 = vpack.c.b16 %v176, %v175
    %v234 = vpack.c.b16 %v178, %v177
    %v235 = vpack.c.b16 %v180, %v179
    %v236 = vpack.c.b16 %v182, %v181
    %v237 = vpack.c.b16 %v184, %v183
    %v238 = vpack.c.b16 %v186, %v185
    %v239 = vpack.c.b16 %v188, %v187
    %v240 = vpack.c.b16 %v190, %v189
    %v241 = vpack.c.b16 %v192, %v191
    %v242 = vpack.c.b16 %v194, %v193
    %v243 = vpack.c.b16 %v196, %v195
    %v244 = vpack.c.b16 %v198, %v197
    %v245 = vpack.c.b16 %v200, %v199
    %v246 = vpack.c.b16 %v202, %v201
    %v247 = vpack.c.b16 %v204, %v203
    %v248 = vpack.c.b16 %v206, %v205
    %v249 = vpack.c.b16 %v208, %v207
    %v250 = vpack.c.b16 %v210, %v209
    %v251 = vpack.c.b16 %v212, %v211
    %v252 = vpack.c.b16 %v214, %v213
    %v253 = vpack.c.b16 %v216, %v215
    %v254 = vpack.c.b16 %v218, %v217
    %v255 = vpack.c.b16 %v220, %v219
    %v256 = vpack.c.b16 %v222, %v221
    %v257 = vpack.c.b16 %v224, %v223
    %v258 = vpack.c.b16 %v226, %v225
    %291 = vmatpush.bf16.msra.mxu0 %v234
    %292 = vmatpush.bf16.msra.mxu0 %v233
    %293 = vmatpush.bf16.msra.mxu0 %v232
    %294 = vmatpush.bf16.msra.mxu0 %v231
    %295 = vmatpush.bf16.msra.mxu0 %v230
    %296 = vmatpush.bf16.msra.mxu0 %v229
    %297 = vmatpush.bf16.msra.mxu0 %v228
    %298 = vmatpush.bf16.msra.mxu0 %v227
    %299 = vmatmul.bf16.gmra.mxu0 %v91
    %v300 = vpop.f32.mrf.mxu0
    %v301 = vadd.f32 %v83, %v300
    %v302 = vpop.f32.mrf.mxu0
    %303 = vdwg.mxu0
    %304 = vmatpush.bf16.msra.mxu0 %v242
    %305 = vmatpush.bf16.msra.mxu0 %v241
    %306 = vmatpush.bf16.msra.mxu0 %v240
    %307 = vmatpush.bf16.msra.mxu0 %v239
    %308 = vmatpush.bf16.msra.mxu0 %v238
    %309 = vmatpush.bf16.msra.mxu0 %v237
    %310 = vmatpush.bf16.msra.mxu0 %v236
    %311 = vmatpush.bf16.msra.mxu0 %v235
    %312 = vmatmul.bf16.gmra.mxu0 %v92
    %v313 = vpop.f32.mrf.mxu0
    %v314 = vadd.f32 %v301, %v313
    %v315 = vpop.f32.mrf.mxu0
    %316 = vdwg.mxu0
    %317 = vmatpush.bf16.msra.mxu0 %v250
    %318 = vmatpush.bf16.msra.mxu0 %v249
    %319 = vmatpush.bf16.msra.mxu0 %v248
    %320 = vmatpush.bf16.msra.mxu0 %v247
    %321 = vmatpush.bf16.msra.mxu0 %v246
    %322 = vmatpush.bf16.msra.mxu0 %v245
    %323 = vmatpush.bf16.msra.mxu0 %v244
    %324 = vmatpush.bf16.msra.mxu0 %v243
    %325 = vmatmul.bf16.gmra.mxu0 %v93
    %v326 = vpop.f32.mrf.mxu0
    %v327 = vadd.f32 %v314, %v326
    %v328 = vpop.f32.mrf.mxu0
    %329 = vdwg.mxu0
    %330 = vmatpush.bf16.msra.mxu0 %v258
    %331 = vmatpush.bf16.msra.mxu0 %v257
    %332 = vmatpush.bf16.msra.mxu0 %v256
    %333 = vmatpush.bf16.msra.mxu0 %v255
    %334 = vmatpush.bf16.msra.mxu0 %v254
    %335 = vmatpush.bf16.msra.mxu0 %v253
    %336 = vmatpush.bf16.msra.mxu0 %v252
    %337 = vmatpush.bf16.msra.mxu0 %v251
    %338 = vmatmul.bf16.gmra.mxu0 %v94
    %v339 = vpop.f32.mrf.mxu0
    %v340 = vadd.f32 %v327, %v339
    %v341 = vpop.f32.mrf.mxu0
    %342 = vdwg.mxu0
    %vm343 = vcmask 261120
    %344 = vst.msk [vmem:[#allocation2] sm:$0xff] %vm343, %v340
    // Predicated region
    $region14: #{tpu_custom_call.1} parent=1 // pred_check
      _
    $region15: #{tpu_custom_call.1} parent=1 // pred_check_branch
      %346 = sbr.rel (0) target = $region17
    $region16: #{tpu_custom_call.1} parent=1 // pred_region
      %348 = vsyncadd [#allocation3], 0
      %s350 = sshll.u32 [#allocation2], 4
      %s351 = int_to_ptr.vmem [resolvable:$true] %s350
      %s352 = sshll.u32 %s3, 4
      %s353 = int_to_ptr.hbm [resolvable:$true] %s352
      %355 = dma.vmem_to_hbm [thread:$0]  %s351, 128, %s353, [#allocation3]
    $region17: #{tpu_custom_call.1} parent=1 // pred_fallthru
      _
    // Predicated region
    $region18: #{tpu_custom_call.1} parent=1 // pred_check
      _
    $region19: #{tpu_custom_call.1} parent=1 // pred_check_branch
      %357 = sbr.rel (0) target = $region21
    $region20: #{tpu_custom_call.1} parent=1 // pred_region
      %359 = dma.done [#allocation3], 128
    $region21: #{tpu_custom_call.1} parent=1 // pred_fallthru
      _
    %360 = vsyncpa [#allocation3], 1

</llo_original>
